<compile_context>
chip_gen: v7x
topology: tpu7x:2x2x1
jax: 0.10.0
libtpu: 0.0.40
codegen_flags: <defaults>
</compile_context>

<pallas_src>
import functools
import math

import jax
import jax.numpy as jnp
from jax.experimental import pallas as pl
from jax.experimental.pallas import tpu as pltpu


def _emitter_kernel(emd_ref, h0_ref,
                    w_hid_ref, b_hid_ref,
                    w_i_ref, b_i_ref,
                    w_h_ref, b_h_ref,
                    w_lin_ref, b_lin_ref,
                    xi_ref, h_out_ref, *, Hp):
    """Whole forward in VMEM: input proj, packed-gate GRU step, output proj.

    Hp is the 128-lane-padded hidden size; each gate occupies lanes
    [g*Hp, (g+1)*Hp) of the packed [B, 3*Hp] gate activations, so the per-gate
    slices below are tile-aligned static slices (no cross-lane shuffles).
    """
    emd = emd_ref[...]                      # [B, E]
    h0 = h0_ref[...]                        # [B, Hp]  (padded lanes are 0)

    # hidden linear + leaky_relu(0.1)
    x = jnp.dot(emd, w_hid_ref[...], preferred_element_type=jnp.float32) + b_hid_ref[...]
    x = jnp.maximum(x, 0.1 * x)             # leaky_relu, slope 0.1 < 1

    # Two MXU contractions produce all three gates (128-lane-aligned packing).
    gi = jnp.dot(x, w_i_ref[...], preferred_element_type=jnp.float32) + b_i_ref[...]   # [B, 3Hp]
    gh = jnp.dot(h0, w_h_ref[...], preferred_element_type=jnp.float32) + b_h_ref[...]  # [B, 3Hp]

    i_r, i_z, i_n = gi[:, :Hp], gi[:, Hp:2 * Hp], gi[:, 2 * Hp:]
    h_r, h_z, h_n = gh[:, :Hp], gh[:, Hp:2 * Hp], gh[:, 2 * Hp:]

    r = jax.nn.sigmoid(i_r + h_r)
    z = jax.nn.sigmoid(i_z + h_z)
    n = jnp.tanh(i_n + r * h_n)             # r scales only the hidden term (PyTorch nn.GRU)
    h_new = (1.0 - z) * n + z * h0          # padded lanes: 0.5*0 + 0.5*0 = 0 (stay zero)

    # output linear (lane-dense: Dp is a multiple of 128; wrapper slices d_flat)
    xi = jnp.dot(h_new, w_lin_ref[...], preferred_element_type=jnp.float32) + b_lin_ref[...]
    xi_ref[...] = xi
    h_out_ref[...] = h_new                  # unmasked store (Hp lanes)


def _round_up(v, m):
    return ((v + m - 1) // m) * m


def prepare_params(params):
    """One-time (eager, outside jit) re-layout of PyTorch-convention weights.

    - transpose [out,in] -> [in,out] so the kernel computes x @ W
    - pad hidden width H to Hp = round_up(H, 128) and pack the three GRU gates
      at 128-lane-aligned column offsets (0, Hp, 2*Hp) of a [Hp, 3*Hp] matrix
    - zero all padded weight rows/columns and bias lanes (keeps padded h lanes 0)
    - zero-pad the output projection columns to a 128-lane multiple
    """
    H, E = params["w_hid"].shape
    Hp = _round_up(H, 128)

    w_hid_p = jnp.zeros((E, Hp), jnp.float32).at[:, :H].set(params["w_hid"].T)
    b_hid_p = jnp.zeros((1, Hp), jnp.float32).at[0, :H].set(params["b_hid"])

    def pack_gates(w, b):                    # w: [3H, H], b: [3H]
        w_p = jnp.zeros((Hp, 3 * Hp), jnp.float32)
        b_p = jnp.zeros((1, 3 * Hp), jnp.float32)
        for g in range(3):                   # gate order r, z, n
            w_p = w_p.at[:H, g * Hp:g * Hp + H].set(w[g * H:(g + 1) * H].T)
            b_p = b_p.at[0, g * Hp:g * Hp + H].set(b[g * H:(g + 1) * H])
        return w_p, b_p

    w_i_p, b_i_p = pack_gates(params["w_ih"], params["b_ih"])
    w_h_p, b_h_p = pack_gates(params["w_hh"], params["b_hh"])

    d_flat = params["w_lin"].shape[0]
    Dp = _round_up(d_flat, 128)
    w_lin_p = jnp.zeros((Hp, Dp), jnp.float32).at[:H, :d_flat].set(params["w_lin"].T)
    b_lin_p = jnp.zeros((1, Dp), jnp.float32).at[0, :d_flat].set(params["b_lin"])

    # (Optional per review: cast weights to bf16 here to halve weight DMA bytes;
    #  kept f32 to stay bit-faithful to the PyTorch module.)
    return {
        "w_hid_p": w_hid_p, "b_hid_p": b_hid_p,
        "w_i_p": w_i_p, "b_i_p": b_i_p,
        "w_h_p": w_h_p, "b_h_p": b_h_p,
        "w_lin_p": w_lin_p, "b_lin_p": b_lin_p,
    }


@functools.partial(jax.jit, static_argnames=("design_dim", "hidden_dim"))
def gru_emitter_forward(prepped, emd, h, design_dim, hidden_dim):
    """Forward pass. prepped = prepare_params(params); emd [B,E]; h None or [1,B,H]."""
    B, E = emd.shape
    H = hidden_dim
    Hp = prepped["w_i_p"].shape[0]
    Dp = prepped["w_lin_p"].shape[1]
    d_flat = math.prod(design_dim)

    # Padded, lane-dense hidden state (padded lanes must start at exactly 0).
    if h is None:
        h0_p = jnp.zeros((B, Hp), jnp.float32)
    else:
        h0_p = jnp.zeros((B, Hp), jnp.float32).at[:, :H].set(h[0].astype(jnp.float32))

    args = (emd.astype(jnp.float32), h0_p,
            prepped["w_hid_p"], prepped["b_hid_p"],
            prepped["w_i_p"], prepped["b_i_p"],
            prepped["w_h_p"], prepped["b_h_p"],
            prepped["w_lin_p"], prepped["b_lin_p"])

    vmem = pl.BlockSpec(memory_space=pltpu.MemorySpace.VMEM)

    # Advisory cost hint so XLA schedules this latency-bound custom call sensibly.
    flops = 2 * B * (E * Hp + 2 * Hp * 3 * Hp + Hp * Dp)
    bytes_accessed = 4 * (sum(int(a.size) for a in args) + B * Dp + B * Hp)
    cost = pl.CostEstimate(flops=flops,
                           transcendentals=3 * B * Hp,
                           bytes_accessed=bytes_accessed)

    xi_pad, h_out_p = pl.pallas_call(
        functools.partial(_emitter_kernel, Hp=Hp),
        out_shape=(
            jax.ShapeDtypeStruct((B, Dp), jnp.float32),
            jax.ShapeDtypeStruct((B, Hp), jnp.float32),
        ),
        in_specs=[vmem] * len(args),
        out_specs=(vmem, vmem),
        # h0_p is a jit-internal intermediate with the same padded shape/dtype as
        # h_out, so this alias is free (no donation/defensive-copy issue).
        input_output_aliases={1: 1},
        cost_estimate=cost,
    )(*args)

    xi = xi_pad[:, :d_flat].reshape((B,) + tuple(design_dim))
    return xi, h_out_p[None, :, :H]


def init_params(key, encoding_dim, hidden_dim, design_dim):
    """Deterministic synthetic parameters with PyTorch shape conventions."""
    d_flat = math.prod(design_dim)
    keys = jax.random.split(key, 8)

    def u(k, shape, fan_in):
        bound = 1.0 / jnp.sqrt(jnp.float32(fan_in))
        return jax.random.uniform(k, shape, jnp.float32, -bound, bound)

    return {
        # nn.Linear(encoding_dim, hidden_dim): weight [H, E], bias [H]
        "w_hid": u(keys[0], (hidden_dim, encoding_dim), encoding_dim),
        "b_hid": u(keys[1], (hidden_dim,), encoding_dim),
        # nn.GRU(hidden_dim, hidden_dim): weight_ih_l0 [3H, H], weight_hh_l0 [3H, H]
        "w_ih": u(keys[2], (3 * hidden_dim, hidden_dim), hidden_dim),
        "b_ih": u(keys[3], (3 * hidden_dim,), hidden_dim),
        "w_hh": u(keys[4], (3 * hidden_dim, hidden_dim), hidden_dim),
        "b_hh": u(keys[5], (3 * hidden_dim,), hidden_dim),
        # nn.Linear(hidden_dim, d_flat): weight [D, H], bias [D]
        "w_lin": u(keys[6], (d_flat, hidden_dim), hidden_dim),
        "b_lin": u(keys[7], (d_flat,), hidden_dim),
    }


def _reference_forward(params, emd, h, design_dim):
    """Pure-JAX reference (mirrors the PyTorch forward) for a correctness check."""
    B = emd.shape[0]
    hidden_dim = params["w_hid"].shape[0]
    h0 = jnp.zeros((B, hidden_dim), jnp.float32) if h is None else h[0]

    x = emd @ params["w_hid"].T + params["b_hid"]
    x = jnp.where(x >= 0, x, 0.1 * x)

    gi = x @ params["w_ih"].T + params["b_ih"]
    gh = h0 @ params["w_hh"].T + params["b_hh"]
    i_r, i_z, i_n = jnp.split(gi, 3, axis=-1)
    h_r, h_z, h_n = jnp.split(gh, 3, axis=-1)
    r = jax.nn.sigmoid(i_r + h_r)
    z = jax.nn.sigmoid(i_z + h_z)
    n = jnp.tanh(i_n + r * h_n)
    h_new = (1.0 - z) * n + z * h0

    xi_flat = h_new @ params["w_lin"].T + params["b_lin"]
    return xi_flat.reshape(xi_flat.shape[:-1] + design_dim), h_new[None]


if __name__ == "__main__":
    encoding_dim = 16
    hidden_dim = 32
    design_dim = (2, 2)
    batch = 2

    key = jax.random.PRNGKey(0)
    k_params, k_emd, k_h = jax.random.split(key, 3)

    params = init_params(k_params, encoding_dim, hidden_dim, design_dim)
    prepped = prepare_params(params)            # one-time weight re-layout (outside jit)
    prepped = jax.block_until_ready(prepped)

    emd = jax.random.normal(k_emd, (batch, encoding_dim), jnp.float32)
    h_in = jax.random.normal(k_h, (1, batch, hidden_dim), jnp.float32)

    # h=None path (fresh hidden state)
    xi0, h0_out = gru_emitter_forward(prepped, emd, None, design_dim, hidden_dim)
    # provided-h path
    xi1, h1_out = gru_emitter_forward(prepped, emd, h_in, design_dim, hidden_dim)
    jax.block_until_ready((xi0, h0_out, xi1, h1_out))

    # correctness check against pure-JAX reference
    xi0_ref, h0_ref = _reference_forward(params, emd, None, design_dim)
    xi1_ref, h1_ref = _reference_forward(params, emd, h_in, design_dim)
    assert xi0.shape == (batch,) + design_dim and h0_out.shape == (1, batch, hidden_dim)
    assert jnp.allclose(xi0, xi0_ref, atol=1e-5), "xi (h=None) mismatch"
    assert jnp.allclose(h0_out, h0_ref, atol=1e-5), "h (h=None) mismatch"
    assert jnp.allclose(xi1, xi1_ref, atol=1e-5), "xi (h given) mismatch"
    assert jnp.allclose(h1_out, h1_ref, atol=1e-5), "h (h given) mismatch"

    print("KERNEL_OK")
</pallas_src>

<mosaic_0001>
module attributes {stable_mosaic.version = 11 : i64} {
  func.func @_emitter_kernel(%arg0: memref<2x16xf32, #tpu.memory_space<vmem>>, %arg1: memref<2x128xf32, #tpu.memory_space<vmem>>, %arg2: memref<16x128xf32, #tpu.memory_space<vmem>>, %arg3: memref<1x128xf32, #tpu.memory_space<vmem>>, %arg4: memref<128x384xf32, #tpu.memory_space<vmem>>, %arg5: memref<1x384xf32, #tpu.memory_space<vmem>>, %arg6: memref<128x384xf32, #tpu.memory_space<vmem>>, %arg7: memref<1x384xf32, #tpu.memory_space<vmem>>, %arg8: memref<128x128xf32, #tpu.memory_space<vmem>>, %arg9: memref<1x128xf32, #tpu.memory_space<vmem>>, %arg10: memref<2x128xf32, #tpu.memory_space<vmem>>, %arg11: memref<2x128xf32, #tpu.memory_space<vmem>>) attributes {dimension_semantics = [], scalar_prefetch = 0 : i64, scratch_operands = 0 : i64, tpu.core_type = #tpu.core_type<tc>} {
    %c0 = arith.constant 0 : index
    %c0_0 = arith.constant 0 : index
    %0 = vector.load %arg0[%c0, %c0_0] : memref<2x16xf32, #tpu.memory_space<vmem>>, vector<2x16xf32>
    %c0_1 = arith.constant 0 : index
    %c0_2 = arith.constant 0 : index
    %1 = vector.load %arg1[%c0_1, %c0_2] : memref<2x128xf32, #tpu.memory_space<vmem>>, vector<2x128xf32>
    %c0_3 = arith.constant 0 : index
    %c0_4 = arith.constant 0 : index
    %2 = vector.load %arg2[%c0_3, %c0_4] : memref<16x128xf32, #tpu.memory_space<vmem>>, vector<16x128xf32>
    %cst = arith.constant dense<0.000000e+00> : vector<2x128xf32>
    %3 = tpu.matmul %0, %2, %cst {dimension_numbers = #tpu.dot_dimension_numbers<[1], [0], [0], [1], [0, 0, 1, 1], [], []>} : vector<2x16xf32>, vector<16x128xf32>, vector<2x128xf32> -> vector<2x128xf32>
    %c0_5 = arith.constant 0 : index
    %c0_6 = arith.constant 0 : index
    %4 = vector.load %arg3[%c0_5, %c0_6] : memref<1x128xf32, #tpu.memory_space<vmem>>, vector<1x128xf32>
    %5 = vector.broadcast %4 : vector<1x128xf32> to vector<2x128xf32>
    %6 = arith.addf %3, %5 : vector<2x128xf32>
    %cst_7 = arith.constant 1.000000e-01 : f32
    %7 = vector.broadcast %cst_7 : f32 to vector<2x128xf32>
    %8 = arith.mulf %7, %6 : vector<2x128xf32>
    %9 = arith.maximumf %6, %8 : vector<2x128xf32>
    %c0_8 = arith.constant 0 : index
    %c0_9 = arith.constant 0 : index
    %10 = vector.load %arg4[%c0_8, %c0_9] : memref<128x384xf32, #tpu.memory_space<vmem>>, vector<128x384xf32>
    %cst_10 = arith.constant dense<0.000000e+00> : vector<2x384xf32>
    %11 = tpu.matmul %9, %10, %cst_10 {dimension_numbers = #tpu.dot_dimension_numbers<[1], [0], [0], [1], [0, 0, 1, 1], [], []>} : vector<2x128xf32>, vector<128x384xf32>, vector<2x384xf32> -> vector<2x384xf32>
    %c0_11 = arith.constant 0 : index
    %c0_12 = arith.constant 0 : index
    %12 = vector.load %arg5[%c0_11, %c0_12] : memref<1x384xf32, #tpu.memory_space<vmem>>, vector<1x384xf32>
    %13 = vector.broadcast %12 : vector<1x384xf32> to vector<2x384xf32>
    %14 = arith.addf %11, %13 : vector<2x384xf32>
    %c0_13 = arith.constant 0 : index
    %c0_14 = arith.constant 0 : index
    %15 = vector.load %arg6[%c0_13, %c0_14] : memref<128x384xf32, #tpu.memory_space<vmem>>, vector<128x384xf32>
    %cst_15 = arith.constant dense<0.000000e+00> : vector<2x384xf32>
    %16 = tpu.matmul %1, %15, %cst_15 {dimension_numbers = #tpu.dot_dimension_numbers<[1], [0], [0], [1], [0, 0, 1, 1], [], []>} : vector<2x128xf32>, vector<128x384xf32>, vector<2x384xf32> -> vector<2x384xf32>
    %c0_16 = arith.constant 0 : index
    %c0_17 = arith.constant 0 : index
    %17 = vector.load %arg7[%c0_16, %c0_17] : memref<1x384xf32, #tpu.memory_space<vmem>>, vector<1x384xf32>
    %18 = vector.broadcast %17 : vector<1x384xf32> to vector<2x384xf32>
    %19 = arith.addf %16, %18 : vector<2x384xf32>
    %20 = vector.extract_strided_slice %14 {offsets = [0, 0], sizes = [2, 128], strides = [1, 1]} : vector<2x384xf32> to vector<2x128xf32>
    %21 = vector.extract_strided_slice %14 {offsets = [0, 128], sizes = [2, 128], strides = [1, 1]} : vector<2x384xf32> to vector<2x128xf32>
    %22 = vector.extract_strided_slice %14 {offsets = [0, 256], sizes = [2, 128], strides = [1, 1]} : vector<2x384xf32> to vector<2x128xf32>
    %23 = vector.extract_strided_slice %19 {offsets = [0, 0], sizes = [2, 128], strides = [1, 1]} : vector<2x384xf32> to vector<2x128xf32>
    %24 = vector.extract_strided_slice %19 {offsets = [0, 128], sizes = [2, 128], strides = [1, 1]} : vector<2x384xf32> to vector<2x128xf32>
    %25 = vector.extract_strided_slice %19 {offsets = [0, 256], sizes = [2, 128], strides = [1, 1]} : vector<2x384xf32> to vector<2x128xf32>
    %26 = arith.addf %20, %23 : vector<2x128xf32>
    %27 = arith.negf %26 : vector<2x128xf32>
    %28 = math.exp %27 : vector<2x128xf32>
    %cst_18 = arith.constant 1.000000e+00 : f32
    %29 = vector.broadcast %cst_18 : f32 to vector<2x128xf32>
    %30 = arith.addf %29, %28 : vector<2x128xf32>
    %31 = arith.divf %29, %30 : vector<2x128xf32>
    %32 = arith.addf %21, %24 : vector<2x128xf32>
    %33 = arith.negf %32 : vector<2x128xf32>
    %34 = math.exp %33 : vector<2x128xf32>
    %cst_19 = arith.constant 1.000000e+00 : f32
    %35 = vector.broadcast %cst_19 : f32 to vector<2x128xf32>
    %36 = arith.addf %35, %34 : vector<2x128xf32>
    %37 = arith.divf %35, %36 : vector<2x128xf32>
    %38 = arith.mulf %31, %25 : vector<2x128xf32>
    %39 = arith.addf %22, %38 : vector<2x128xf32>
    %40 = math.tanh %39 : vector<2x128xf32>
    %cst_20 = arith.constant 1.000000e+00 : f32
    %41 = vector.broadcast %cst_20 : f32 to vector<2x128xf32>
    %42 = arith.subf %41, %37 : vector<2x128xf32>
    %43 = arith.mulf %42, %40 : vector<2x128xf32>
    %44 = arith.mulf %37, %1 : vector<2x128xf32>
    %45 = arith.addf %43, %44 : vector<2x128xf32>
    %c0_21 = arith.constant 0 : index
    %c0_22 = arith.constant 0 : index
    %46 = vector.load %arg8[%c0_21, %c0_22] : memref<128x128xf32, #tpu.memory_space<vmem>>, vector<128x128xf32>
    %cst_23 = arith.constant dense<0.000000e+00> : vector<2x128xf32>
    %47 = tpu.matmul %45, %46, %cst_23 {dimension_numbers = #tpu.dot_dimension_numbers<[1], [0], [0], [1], [0, 0, 1, 1], [], []>} : vector<2x128xf32>, vector<128x128xf32>, vector<2x128xf32> -> vector<2x128xf32>
    %c0_24 = arith.constant 0 : index
    %c0_25 = arith.constant 0 : index
    %48 = vector.load %arg9[%c0_24, %c0_25] : memref<1x128xf32, #tpu.memory_space<vmem>>, vector<1x128xf32>
    %49 = vector.broadcast %48 : vector<1x128xf32> to vector<2x128xf32>
    %50 = arith.addf %47, %49 : vector<2x128xf32>
    %c0_26 = arith.constant 0 : index
    %c0_27 = arith.constant 0 : index
    %51 = vector.load %arg10[%c0_26, %c0_27] : memref<2x128xf32, #tpu.memory_space<vmem>>, vector<2x128xf32>
    tpu.vector_store %arg10[%c0_26, %c0_27], %50 {strides = array<i32>} : memref<2x128xf32, #tpu.memory_space<vmem>>, vector<2x128xf32>,
    %c0_28 = arith.constant 0 : index
    %c0_29 = arith.constant 0 : index
    %52 = vector.load %arg11[%c0_28, %c0_29] : memref<2x128xf32, #tpu.memory_space<vmem>>, vector<2x128xf32>
    tpu.vector_store %arg11[%c0_28, %c0_29], %45 {strides = array<i32>} : memref<2x128xf32, #tpu.memory_space<vmem>>, vector<2x128xf32>,
    return
  }
}

</mosaic_0001>

<llo_original>
// kernel: gru_emitter_forward.1
$region0: #{gru_emitter_forward.1}
  #allocation0 [shape = 'u32[]', space=smem, size = 0x4, offset = 0x4, fixed_abs, tag = 'smem constant byte address 0x4 - core index']
  #allocation1 [shape = 'u32[144,128]{1,0:T(1,128)}', space=vmem, size = 0x12000, scoped, tag = 'internal scratch']
  %s0 = inlined_call_operand.vmem [shape: f32[2,16], index: 0, kind: input, shape index: {}]
  %s1 = inlined_call_operand.vmem [shape: f32[2,128], index: 1, kind: input, shape index: {}, may-alias: {1,11}]
  %s2 = inlined_call_operand.vmem [shape: f32[16,128], index: 2, kind: input, shape index: {}]
  %s3 = inlined_call_operand.hbm [shape: f32[1,128], index: 3, kind: input, shape index: {}]
  %s4 = inlined_call_operand.hbm [shape: f32[128,384], index: 4, kind: input, shape index: {}]
  %s5 = inlined_call_operand.vmem [shape: f32[1,384], index: 5, kind: input, shape index: {}]
  %s6 = inlined_call_operand.hbm [shape: f32[128,384], index: 6, kind: input, shape index: {}]
  %s7 = inlined_call_operand.vmem [shape: f32[1,384], index: 7, kind: input, shape index: {}]
  %s8 = inlined_call_operand.hbm [shape: f32[128,128], index: 8, kind: input, shape index: {}]
  %s9 = inlined_call_operand.hbm [shape: f32[1,128], index: 9, kind: input, shape index: {}]
  %s10 = inlined_call_operand.vmem [shape: f32[2,128], index: 10, kind: output, shape index: {0}]
  %s11 = inlined_call_operand.vmem [shape: f32[2,128], index: 11, kind: output, shape index: {1}, may-alias: {1,11}]
  %12 = xla_tuple %s10, %s11
  %s13 = sld [smem:[#allocation0]]
  $region78: #{gru_emitter_forward.1} parent=0
    _
  %s15 = ssub.s32 1, %s13
  %s16 = scalar_select 0, %s15, %s13
  $region1: #{gru_emitter_forward.1} parent=0
    #allocation2 [shape = 'u8[512]{0}', space=vmem, size = 0x400, scoped, tag = 'input window, operand 3, single buffered']
    #allocation3 [shape = 's32[1]{0}', space=sflag, size = 0x4, scoped, tag = 'scoped memory for gru_emitter_forward.1']
    #allocation4 [shape = 'u8[196608]{0}', space=vmem, size = 0x30000, scoped, tag = 'input window, operand 4, single buffered']
    #allocation5 [shape = 's32[1]{0}', space=sflag, size = 0x4, scoped, tag = 'scoped memory for gru_emitter_forward.1']
    #allocation6 [shape = 'u8[196608]{0}', space=vmem, size = 0x30000, scoped, tag = 'input window, operand 6, single buffered']
    #allocation7 [shape = 'u8[65536]{0}', space=vmem, size = 0x10000, scoped, tag = 'input window, operand 8, single buffered']
    #allocation8 [shape = 's32[1]{0}', space=sflag, size = 0x4, scoped, tag = 'scoped memory for gru_emitter_forward.1']
    #allocation9 [shape = 'u8[512]{0}', space=vmem, size = 0x400, scoped, tag = 'input window, operand 9, single buffered']
    %17 = vsyncpa [#allocation3], 0
    %18 = vsyncpa [#allocation5], 0
    %19 = vsyncpa [#allocation8], 0
    // Predicated region
    $region2: #{gru_emitter_forward.1} parent=1 // pred_check
      _
    $region3: #{gru_emitter_forward.1} parent=1 // pred_check_branch
      %21 = sbr.rel (0) target = $region5
    $region4: #{gru_emitter_forward.1} parent=1 // pred_region
      _
    $region5: #{gru_emitter_forward.1} parent=1 // pred_fallthru
      _
    // Predicated region
    $region6: #{gru_emitter_forward.1} parent=1 // pred_check
      _
    $region7: #{gru_emitter_forward.1} parent=1 // pred_check_branch
      %23 = sbr.rel (0) target = $region9
    $region8: #{gru_emitter_forward.1} parent=1 // pred_region
      _
    $region9: #{gru_emitter_forward.1} parent=1 // pred_fallthru
      _
    // Predicated region
    $region10: #{gru_emitter_forward.1} parent=1 // pred_check
      _
    $region11: #{gru_emitter_forward.1} parent=1 // pred_check_branch
      %25 = sbr.rel (0) target = $region13
    $region12: #{gru_emitter_forward.1} parent=1 // pred_region
      _
    $region13: #{gru_emitter_forward.1} parent=1 // pred_fallthru
      _
    // Predicated region
    $region14: #{gru_emitter_forward.1} parent=1 // pred_check
      _
    $region15: #{gru_emitter_forward.1} parent=1 // pred_check_branch
      %27 = sbr.rel (0) target = $region17
    $region16: #{gru_emitter_forward.1} parent=1 // pred_region
      %s29 = ssub.s32 16, 16
      %30 = vsyncadd [#allocation3], %s29
      %s32 = sshll.u32 [#allocation2], 4
      %s33 = int_to_ptr.vmem [resolvable:$true] %s32
      %35 = dma.hbm_to_vmem [thread:$0]  %s3, 16, %s33, [#allocation3]
    $region17: #{gru_emitter_forward.1} parent=1 // pred_fallthru
      _
    // Predicated region
    $region18: #{gru_emitter_forward.1} parent=1 // pred_check
      _
    $region19: #{gru_emitter_forward.1} parent=1 // pred_check_branch
      %37 = sbr.rel (0) target = $region21
    $region20: #{gru_emitter_forward.1} parent=1 // pred_region
      %s39 = ssub.s32 6144, 6144
      %40 = vsyncadd [#allocation5], %s39
      %s41 = sshll.u32 [#allocation4], 4
      %s42 = int_to_ptr.vmem [resolvable:$true] %s41
      %47 = dma.hbm_to_vmem [thread:$0]  %s4, 6144, %s42, [#allocation5], 384, 384, 24
    $region21: #{gru_emitter_forward.1} parent=1 // pred_fallthru
      _
    // Predicated region
    $region22: #{gru_emitter_forward.1} parent=1 // pred_check
      _
    $region23: #{gru_emitter_forward.1} parent=1 // pred_check_branch
      %49 = sbr.rel (0) target = $region25
    $region24: #{gru_emitter_forward.1} parent=1 // pred_region
      _
    $region25: #{gru_emitter_forward.1} parent=1 // pred_fallthru
      _
    // Predicated region
    $region26: #{gru_emitter_forward.1} parent=1 // pred_check
      _
    $region27: #{gru_emitter_forward.1} parent=1 // pred_check_branch
      %51 = sbr.rel (0) target = $region29
    $region28: #{gru_emitter_forward.1} parent=1 // pred_region
      %s53 = ssub.s32 6144, 6144
      %54 = vsyncadd [#allocation5], %s53
      %s55 = sshll.u32 [#allocation6], 4
      %s56 = int_to_ptr.vmem [resolvable:$true] %s55
      %61 = dma.hbm_to_vmem [thread:$0]  %s6, 6144, %s56, [#allocation5], 384, 384, 24
    $region29: #{gru_emitter_forward.1} parent=1 // pred_fallthru
      _
    // Predicated region
    $region30: #{gru_emitter_forward.1} parent=1 // pred_check
      _
    $region31: #{gru_emitter_forward.1} parent=1 // pred_check_branch
      %63 = sbr.rel (0) target = $region33
    $region32: #{gru_emitter_forward.1} parent=1 // pred_region
      _
    $region33: #{gru_emitter_forward.1} parent=1 // pred_fallthru
      _
    // Predicated region
    $region34: #{gru_emitter_forward.1} parent=1 // pred_check
      _
    $region35: #{gru_emitter_forward.1} parent=1 // pred_check_branch
      %65 = sbr.rel (0) target = $region37
    $region36: #{gru_emitter_forward.1} parent=1 // pred_region
      %s67 = ssub.s32 2048, 2048
      %68 = vsyncadd [#allocation8], %s67
      %s69 = sshll.u32 [#allocation7], 4
      %s70 = int_to_ptr.vmem [resolvable:$true] %s69
      %75 = dma.hbm_to_vmem [thread:$0]  %s8, 2048, %s70, [#allocation8], 128, 128, 8
    $region37: #{gru_emitter_forward.1} parent=1 // pred_fallthru
      _
    // Predicated region
    $region38: #{gru_emitter_forward.1} parent=1 // pred_check
      _
    $region39: #{gru_emitter_forward.1} parent=1 // pred_check_branch
      %77 = sbr.rel (0) target = $region41
    $region40: #{gru_emitter_forward.1} parent=1 // pred_region
      %s79 = ssub.s32 16, 16
      %80 = vsyncadd [#allocation8], %s79
      %s82 = sshll.u32 [#allocation9], 4
      %s83 = int_to_ptr.vmem [resolvable:$true] %s82
      %85 = dma.hbm_to_vmem [thread:$0]  %s9, 16, %s83, [#allocation8]
    $region41: #{gru_emitter_forward.1} parent=1 // pred_fallthru
      _
    // Predicated region
    $region42: #{gru_emitter_forward.1} parent=1 // pred_check
      _
    $region43: #{gru_emitter_forward.1} parent=1 // pred_check_branch
      %87 = sbr.rel (0) target = $region45
    $region44: #{gru_emitter_forward.1} parent=1 // pred_region
      %88 = dma.done [#allocation3], 16
    $region45: #{gru_emitter_forward.1} parent=1 // pred_fallthru
      _
    // Predicated region
    $region46: #{gru_emitter_forward.1} parent=1 // pred_check
      _
    $region47: #{gru_emitter_forward.1} parent=1 // pred_check_branch
      %90 = sbr.rel (0) target = $region49
    $region48: #{gru_emitter_forward.1} parent=1 // pred_region
      %91 = dma.done [#allocation5], 6144
    $region49: #{gru_emitter_forward.1} parent=1 // pred_fallthru
      _
    // Predicated region
    $region50: #{gru_emitter_forward.1} parent=1 // pred_check
      _
    $region51: #{gru_emitter_forward.1} parent=1 // pred_check_branch
      %93 = sbr.rel (0) target = $region53
    $region52: #{gru_emitter_forward.1} parent=1 // pred_region
      %94 = dma.done [#allocation5], 6144
    $region53: #{gru_emitter_forward.1} parent=1 // pred_fallthru
      _
    // Predicated region
    $region54: #{gru_emitter_forward.1} parent=1 // pred_check
      _
    $region55: #{gru_emitter_forward.1} parent=1 // pred_check_branch
      %96 = sbr.rel (0) target = $region57
    $region56: #{gru_emitter_forward.1} parent=1 // pred_region
      %97 = dma.done [#allocation8], 2048
    $region57: #{gru_emitter_forward.1} parent=1 // pred_fallthru
      _
    // Predicated region
    $region58: #{gru_emitter_forward.1} parent=1 // pred_check
      _
    $region59: #{gru_emitter_forward.1} parent=1 // pred_check_branch
      %99 = sbr.rel (0) target = $region61
    $region60: #{gru_emitter_forward.1} parent=1 // pred_region
      %100 = dma.done [#allocation8], 16
    $region61: #{gru_emitter_forward.1} parent=1 // pred_fallthru
      _
    %v101 = vld [vmem:[%s0] sm:$0x3]
    %v102 = vld [vmem:[%s1] sm:$0x3]
    %v103 = vld [vmem:[%s2] sm:$0xff]
    %v104 = vld [vmem:[%s2 + $0x8] sm:$0xff]
    %v105 = vld [vmem:[#allocation2] sm:$0x1]
    %v107 = vlaneseq
    %v108 = vshrl.u32 %v107, 7
    %v109 = vsub.s32 0, %v108
    %v110 = vrot.slane %v105, %v109
    %vm112 = vcmask 130048
    %v114 = vsel %vm112, %v101, 0
    %116 = vmatprep.subr.mxu0 0.0
    %117 = vmatpush1.msra.mxu0 %v103
    %118 = vmatprep.subr.mxu0 0.0
    %119 = vmatpush1.msra.mxu0 %v104
    %120 = vmatprep.subr.mxu0 0.0
    %121 = vmatpush1.msra.mxu0 0.0
    %122 = vmatprep.subr.mxu0 0.0
    %123 = vmatpush1.msra.mxu0 0.0
    %124 = vmatprep.subr.mxu0 0.0
    %125 = vmatpush1.msra.mxu0 0.0
    %126 = vmatprep.subr.mxu0 0.0
    %127 = vmatpush1.msra.mxu0 0.0
    %128 = vmatprep.subr.mxu0 0.0
    %129 = vmatpush1.msra.mxu0 0.0
    %130 = vmatprep.subr.mxu0 0.0
    %131 = vmatpush1.msra.mxu0 0.0
    %132 = vmatprep.subr.mxu0 0.0
    %133 = vmatpush1.msra.mxu0 0.0
    %134 = vmatprep.subr.mxu0 0.0
    %135 = vmatpush1.msra.mxu0 0.0
    %136 = vmatprep.subr.mxu0 0.0
    %137 = vmatpush1.msra.mxu0 0.0
    %138 = vmatprep.subr.mxu0 0.0
    %139 = vmatpush1.msra.mxu0 0.0
    %140 = vmatprep.subr.mxu0 0.0
    %141 = vmatpush1.msra.mxu0 0.0
    %142 = vmatprep.subr.mxu0 0.0
    %143 = vmatpush1.msra.mxu0 0.0
    %144 = vmatprep.subr.mxu0 0.0
    %145 = vmatpush1.msra.mxu0 0.0
    %146 = vmatprep.subr.mxu0 0.0
    %147 = vmatpush1.msra.mxu0 0.0
    %148 = vmatprep.subr.mxu0 0.0
    %149 = vmatpush1.msra.mxu0 0.0
    %150 = vmatprep.subr.mxu0 0.0
    %151 = vmatpush1.msra.mxu0 0.0
    %152 = vmatprep.subr.mxu0 0.0
    %153 = vmatpush1.msra.mxu0 0.0
    %154 = vmatprep.subr.mxu0 0.0
    %155 = vmatpush1.msra.mxu0 0.0
    %156 = vmatprep.subr.mxu0 0.0
    %157 = vmatpush1.msra.mxu0 0.0
    %158 = vmatprep.subr.mxu0 0.0
    %159 = vmatpush1.msra.mxu0 0.0
    %160 = vmatprep.subr.mxu0 0.0
    %161 = vmatpush1.msra.mxu0 0.0
    %162 = vmatprep.subr.mxu0 0.0
    %163 = vmatpush1.msra.mxu0 0.0
    %164 = vmatprep.subr.mxu0 0.0
    %165 = vmatpush1.msra.mxu0 0.0
    %166 = vmatprep.subr.mxu0 0.0
    %167 = vmatpush1.msra.mxu0 0.0
    %168 = vmatprep.subr.mxu0 0.0
    %169 = vmatpush1.msra.mxu0 0.0
    %170 = vmatprep.subr.mxu0 0.0
    %171 = vmatpush1.msra.mxu0 0.0
    %172 = vmatprep.subr.mxu0 0.0
    %173 = vmatpush1.msra.mxu0 0.0
    %174 = vmatprep.subr.mxu0 0.0
    %175 = vmatpush1.msra.mxu0 0.0
    %176 = vmatprep.subr.mxu0 0.0
    %177 = vmatpush1.msra.mxu0 0.0
    %178 = vmatprep.subr.mxu0 0.0
    %179 = vmatpush1.msra.mxu0 0.0
    %180 = vmatprep.mubr.f32.mxu0 0.0
    %181 = vmatmul.mubr.f32.gmra.mrb[0].mxu0 %v114
    %v182 = vpop.f32.mrb[0].mxu0
    %v183 = vadd.f32 %v110, %v182
    %v184 = vpop.f32.mrb[0].mxu0
    %185 = vdwg.mxu0
    %v186 = vmul.f32 %v183, 0.1
    %v187 = vmax.f32 %v183, %v186
    %v188 = vld [vmem:[#allocation4] sm:$0xff]
    %v189 = vld [vmem:[#allocation4 + $0x8] sm:$0xff]
    %v190 = vld [vmem:[#allocation4 + $0x10] sm:$0xff]
    %v191 = vld [vmem:[#allocation4 + $0x18] sm:$0xff]
    %v192 = vld [vmem:[#allocation4 + $0x20] sm:$0xff]
    %v193 = vld [vmem:[#allocation4 + $0x28] sm:$0xff]
    %v194 = vld [vmem:[#allocation4 + $0x30] sm:$0xff]
    %v195 = vld [vmem:[#allocation4 + $0x38] sm:$0xff]
    %v196 = vld [vmem:[#allocation4 + $0x40] sm:$0xff]
    %v197 = vld [vmem:[#allocation4 + $0x48] sm:$0xff]
    %v198 = vld [vmem:[#allocation4 + $0x50] sm:$0xff]
    %v199 = vld [vmem:[#allocation4 + $0x58] sm:$0xff]
    %v200 = vld [vmem:[#allocation4 + $0x60] sm:$0xff]
    %v201 = vld [vmem:[#allocation4 + $0x68] sm:$0xff]
    %v202 = vld [vmem:[#allocation4 + $0x70] sm:$0xff]
    %v203 = vld [vmem:[#allocation4 + $0x78] sm:$0xff]
    %v204 = vld [vmem:[#allocation4 + $0x80] sm:$0xff]
    %v205 = vld [vmem:[#allocation4 + $0x88] sm:$0xff]
    %v206 = vld [vmem:[#allocation4 + $0x90] sm:$0xff]
    %v207 = vld [vmem:[#allocation4 + $0x98] sm:$0xff]
    %v208 = vld [vmem:[#allocation4 + $0xa0] sm:$0xff]
    %v209 = vld [vmem:[#allocation4 + $0xa8] sm:$0xff]
    %v210 = vld [vmem:[#allocation4 + $0xb0] sm:$0xff]
    %v211 = vld [vmem:[#allocation4 + $0xb8] sm:$0xff]
    %v212 = vld [vmem:[#allocation4 + $0xc0] sm:$0xff]
    %v213 = vld [vmem:[#allocation4 + $0xc8] sm:$0xff]
    %v214 = vld [vmem:[#allocation4 + $0xd0] sm:$0xff]
    %v215 = vld [vmem:[#allocation4 + $0xd8] sm:$0xff]
    %v216 = vld [vmem:[#allocation4 + $0xe0] sm:$0xff]
    %v217 = vld [vmem:[#allocation4 + $0xe8] sm:$0xff]
    %v218 = vld [vmem:[#allocation4 + $0xf0] sm:$0xff]
    %v219 = vld [vmem:[#allocation4 + $0xf8] sm:$0xff]
    %v220 = vld [vmem:[#allocation4 + $0x100] sm:$0xff]
    %v221 = vld [vmem:[#allocation4 + $0x108] sm:$0xff]
    %v222 = vld [vmem:[#allocation4 + $0x110] sm:$0xff]
    %v223 = vld [vmem:[#allocation4 + $0x118] sm:$0xff]
    %v224 = vld [vmem:[#allocation4 + $0x120] sm:$0xff]
    %v225 = vld [vmem:[#allocation4 + $0x128] sm:$0xff]
    %v226 = vld [vmem:[#allocation4 + $0x130] sm:$0xff]
    %v227 = vld [vmem:[#allocation4 + $0x138] sm:$0xff]
    %v228 = vld [vmem:[#allocation4 + $0x140] sm:$0xff]
    %v229 = vld [vmem:[#allocation4 + $0x148] sm:$0xff]
    %v230 = vld [vmem:[#allocation4 + $0x150] sm:$0xff]
    %v231 = vld [vmem:[#allocation4 + $0x158] sm:$0xff]
    %v232 = vld [vmem:[#allocation4 + $0x160] sm:$0xff]
    %v233 = vld [vmem:[#allocation4 + $0x168] sm:$0xff]
    %v234 = vld [vmem:[#allocation4 + $0x170] sm:$0xff]
    %v235 = vld [vmem:[#allocation4 + $0x178] sm:$0xff]
    %v236 = vld [vmem:[%s5] sm:$0x7]
    %v238 = vlaneseq
    %v239 = vshrl.u32 %v238, 7
    %v240 = vsub.s32 0, %v239
    %v241 = vrot.slane %v236, %v240
    %v242 = vlaneseq
    %v243 = vshrl.u32 %v242, 7
    %v244 = vsub.s32 1, %v243
    %v245 = vrot.slane %v236, %v244
    %v246 = vlaneseq
    %v247 = vshrl.u32 %v246, 7
    %v248 = vsub.s32 2, %v247
    %v249 = vrot.slane %v236, %v248
    %253 = vmatprep.subr.mxu0 %v189
    %254 = vmatpush1.msra.mxu0 %v188
    %255 = vmatprep.subr.mxu0 %v192
    %256 = vmatpush1.msra.mxu0 %v191
    %257 = vmatprep.subr.mxu0 %v195
    %258 = vmatpush1.msra.mxu0 %v194
    %259 = vmatprep.subr.mxu0 %v198
    %260 = vmatpush1.msra.mxu0 %v197
    %261 = vmatprep.subr.mxu0 %v201
    %262 = vmatpush1.msra.mxu0 %v200
    %263 = vmatprep.subr.mxu0 %v204
    %264 = vmatpush1.msra.mxu0 %v203
    %265 = vmatprep.subr.mxu0 %v207
    %266 = vmatpush1.msra.mxu0 %v206
    %267 = vmatprep.subr.mxu0 %v210
    %268 = vmatpush1.msra.mxu0 %v209
    %269 = vmatprep.subr.mxu0 %v213
    %270 = vmatpush1.msra.mxu0 %v212
    %271 = vmatprep.subr.mxu0 %v216
    %272 = vmatpush1.msra.mxu0 %v215
    %273 = vmatprep.subr.mxu0 %v219
    %274 = vmatpush1.msra.mxu0 %v218
    %275 = vmatprep.subr.mxu0 %v222
    %276 = vmatpush1.msra.mxu0 %v221
    %277 = vmatprep.subr.mxu0 %v225
    %278 = vmatpush1.msra.mxu0 %v224
    %279 = vmatprep.subr.mxu0 %v228
    %280 = vmatpush1.msra.mxu0 %v227
    %281 = vmatprep.subr.mxu0 %v231
    %282 = vmatpush1.msra.mxu0 %v230
    %283 = vmatprep.subr.mxu0 %v234
    %284 = vmatpush1.msra.mxu0 %v233
    %285 = vmatprep.subr.mxu0 0.0
    %286 = vmatpush1.msra.mxu0 0.0
    %287 = vmatprep.subr.mxu0 0.0
    %288 = vmatpush1.msra.mxu0 0.0
    %289 = vmatprep.subr.mxu0 0.0
    %290 = vmatpush1.msra.mxu0 0.0
    %291 = vmatprep.subr.mxu0 0.0
    %292 = vmatpush1.msra.mxu0 0.0
    %293 = vmatprep.subr.mxu0 0.0
    %294 = vmatpush1.msra.mxu0 0.0
    %295 = vmatprep.subr.mxu0 0.0
    %296 = vmatpush1.msra.mxu0 0.0
    %297 = vmatprep.subr.mxu0 0.0
    %298 = vmatpush1.msra.mxu0 0.0
    %299 = vmatprep.subr.mxu0 0.0
    %300 = vmatpush1.msra.mxu0 0.0
    %301 = vmatprep.subr.mxu0 0.0
    %302 = vmatpush1.msra.mxu0 0.0
    %303 = vmatprep.subr.mxu0 0.0
    %304 = vmatpush1.msra.mxu0 0.0
    %305 = vmatprep.subr.mxu0 0.0
    %306 = vmatpush1.msra.mxu0 0.0
    %307 = vmatprep.subr.mxu0 0.0
    %308 = vmatpush1.msra.mxu0 0.0
    %309 = vmatprep.subr.mxu0 0.0
    %310 = vmatpush1.msra.mxu0 0.0
    %311 = vmatprep.subr.mxu0 0.0
    %312 = vmatpush1.msra.mxu0 0.0
    %313 = vmatprep.subr.mxu0 0.0
    %314 = vmatpush1.msra.mxu0 0.0
    %315 = vmatprep.subr.mxu0 0.0
    %316 = vmatpush1.msra.mxu0 0.0
    %317 = vmatprep.mubr.f32.mxu0 0.0
    %318 = vmatmul.mubr.f32.gmra.mrb[0].mxu0 %v187
    %v319 = vpop.f32.mrb[0].mxu0
    %v320 = vadd.f32 %v241, %v319
    %v321 = vpop.f32.mrb[0].mxu0
    %v322 = vadd.f32 %v245, %v321
    %323 = vdwg.mxu0
    %324 = vmatprep.subr.mxu0 0.0
    %325 = vmatpush1.msra.mxu0 %v190
    %326 = vmatprep.subr.mxu0 0.0
    %327 = vmatpush1.msra.mxu0 %v193
    %328 = vmatprep.subr.mxu0 0.0
    %329 = vmatpush1.msra.mxu0 %v196
    %330 = vmatprep.subr.mxu0 0.0
    %331 = vmatpush1.msra.mxu0 %v199
    %332 = vmatprep.subr.mxu0 0.0
    %333 = vmatpush1.msra.mxu0 %v202
    %334 = vmatprep.subr.mxu0 0.0
    %335 = vmatpush1.msra.mxu0 %v205
    %336 = vmatprep.subr.mxu0 0.0
    %337 = vmatpush1.msra.mxu0 %v208
    %338 = vmatprep.subr.mxu0 0.0
    %339 = vmatpush1.msra.mxu0 %v211
    %340 = vmatprep.subr.mxu0 0.0
    %341 = vmatpush1.msra.mxu0 %v214
    %342 = vmatprep.subr.mxu0 0.0
    %343 = vmatpush1.msra.mxu0 %v217
    %344 = vmatprep.subr.mxu0 0.0
    %345 = vmatpush1.msra.mxu0 %v220
    %346 = vmatprep.subr.mxu0 0.0
    %347 = vmatpush1.msra.mxu0 %v223
    %348 = vmatprep.subr.mxu0 0.0
    %349 = vmatpush1.msra.mxu0 %v226
    %350 = vmatprep.subr.mxu0 0.0
    %351 = vmatpush1.msra.mxu0 %v229
    %352 = vmatprep.subr.mxu0 0.0
    %353 = vmatpush1.msra.mxu0 %v232
    %354 = vmatprep.subr.mxu0 0.0
    %355 = vmatpush1.msra.mxu0 %v235
    %356 = vmatprep.subr.mxu0 0.0
    %357 = vmatpush1.msra.mxu0 0.0
    %358 = vmatprep.subr.mxu0 0.0
    %359 = vmatpush1.msra.mxu0 0.0
    %360 = vmatprep.subr.mxu0 0.0
    %361 = vmatpush1.msra.mxu0 0.0
    %362 = vmatprep.subr.mxu0 0.0
    %363 = vmatpush1.msra.mxu0 0.0
    %364 = vmatprep.subr.mxu0 0.0
    %365 = vmatpush1.msra.mxu0 0.0
    %366 = vmatprep.subr.mxu0 0.0
    %367 = vmatpush1.msra.mxu0 0.0
    %368 = vmatprep.subr.mxu0 0.0
    %369 = vmatpush1.msra.mxu0 0.0
    %370 = vmatprep.subr.mxu0 0.0
    %371 = vmatpush1.msra.mxu0 0.0
    %372 = vmatprep.subr.mxu0 0.0
    %373 = vmatpush1.msra.mxu0 0.0
    %374 = vmatprep.subr.mxu0 0.0
    %375 = vmatpush1.msra.mxu0 0.0
    %376 = vmatprep.subr.mxu0 0.0
    %377 = vmatpush1.msra.mxu0 0.0
    %378 = vmatprep.subr.mxu0 0.0
    %379 = vmatpush1.msra.mxu0 0.0
    %380 = vmatprep.subr.mxu0 0.0
    %381 = vmatpush1.msra.mxu0 0.0
    %382 = vmatprep.subr.mxu0 0.0
    %383 = vmatpush1.msra.mxu0 0.0
    %384 = vmatprep.subr.mxu0 0.0
    %385 = vmatpush1.msra.mxu0 0.0
    %386 = vmatprep.subr.mxu0 0.0
    %387 = vmatpush1.msra.mxu0 0.0
    %388 = vmatprep.mubr.f32.mxu0 0.0
    %389 = vmatmul.mubr.f32.gmra.mrb[0].mxu0 %v187
    %v390 = vpop.f32.mrb[0].mxu0
    %v391 = vadd.f32 %v249, %v390
    %v392 = vpop.f32.mrb[0].mxu0
    %393 = vdwg.mxu0
    %v394 = vld [vmem:[#allocation6] sm:$0xff]
    %v395 = vld [vmem:[#allocation6 + $0x8] sm:$0xff]
    %v396 = vld [vmem:[#allocation6 + $0x10] sm:$0xff]
    %v397 = vld [vmem:[#allocation6 + $0x18] sm:$0xff]
    %v398 = vld [vmem:[#allocation6 + $0x20] sm:$0xff]
    %v399 = vld [vmem:[#allocation6 + $0x28] sm:$0xff]
    %v400 = vld [vmem:[#allocation6 + $0x30] sm:$0xff]
    %v401 = vld [vmem:[#allocation6 + $0x38] sm:$0xff]
    %v402 = vld [vmem:[#allocation6 + $0x40] sm:$0xff]
    %v403 = vld [vmem:[#allocation6 + $0x48] sm:$0xff]
    %v404 = vld [vmem:[#allocation6 + $0x50] sm:$0xff]
    %v405 = vld [vmem:[#allocation6 + $0x58] sm:$0xff]
    %v406 = vld [vmem:[#allocation6 + $0x60] sm:$0xff]
    %v407 = vld [vmem:[#allocation6 + $0x68] sm:$0xff]
    %v408 = vld [vmem:[#allocation6 + $0x70] sm:$0xff]
    %v409 = vld [vmem:[#allocation6 + $0x78] sm:$0xff]
    %v410 = vld [vmem:[#allocation6 + $0x80] sm:$0xff]
    %v411 = vld [vmem:[#allocation6 + $0x88] sm:$0xff]
    %v412 = vld [vmem:[#allocation6 + $0x90] sm:$0xff]
    %v413 = vld [vmem:[#allocation6 + $0x98] sm:$0xff]
    %v414 = vld [vmem:[#allocation6 + $0xa0] sm:$0xff]
    %v415 = vld [vmem:[#allocation6 + $0xa8] sm:$0xff]
    %v416 = vld [vmem:[#allocation6 + $0xb0] sm:$0xff]
    %v417 = vld [vmem:[#allocation6 + $0xb8] sm:$0xff]
    %v418 = vld [vmem:[#allocation6 + $0xc0] sm:$0xff]
    %v419 = vld [vmem:[#allocation6 + $0xc8] sm:$0xff]
    %v420 = vld [vmem:[#allocation6 + $0xd0] sm:$0xff]
    %v421 = vld [vmem:[#allocation6 + $0xd8] sm:$0xff]
    %v422 = vld [vmem:[#allocation6 + $0xe0] sm:$0xff]
    %v423 = vld [vmem:[#allocation6 + $0xe8] sm:$0xff]
    %v424 = vld [vmem:[#allocation6 + $0xf0] sm:$0xff]
    %v425 = vld [vmem:[#allocation6 + $0xf8] sm:$0xff]
    %v426 = vld [vmem:[#allocation6 + $0x100] sm:$0xff]
    %v427 = vld [vmem:[#allocation6 + $0x108] sm:$0xff]
    %v428 = vld [vmem:[#allocation6 + $0x110] sm:$0xff]
    %v429 = vld [vmem:[#allocation6 + $0x118] sm:$0xff]
    %v430 = vld [vmem:[#allocation6 + $0x120] sm:$0xff]
    %v431 = vld [vmem:[#allocation6 + $0x128] sm:$0xff]
    %v432 = vld [vmem:[#allocation6 + $0x130] sm:$0xff]
    %v433 = vld [vmem:[#allocation6 + $0x138] sm:$0xff]
    %v434 = vld [vmem:[#allocation6 + $0x140] sm:$0xff]
    %v435 = vld [vmem:[#allocation6 + $0x148] sm:$0xff]
    %v436 = vld [vmem:[#allocation6 + $0x150] sm:$0xff]
    %v437 = vld [vmem:[#allocation6 + $0x158] sm:$0xff]
    %v438 = vld [vmem:[#allocation6 + $0x160] sm:$0xff]
    %v439 = vld [vmem:[#allocation6 + $0x168] sm:$0xff]
    %v440 = vld [vmem:[#allocation6 + $0x170] sm:$0xff]
    %v441 = vld [vmem:[#allocation6 + $0x178] sm:$0xff]
    %v442 = vld [vmem:[%s7] sm:$0x7]
    %v444 = vlaneseq
    %v445 = vshrl.u32 %v444, 7
    %v446 = vsub.s32 0, %v445
    %v447 = vrot.slane %v442, %v446
    %v448 = vlaneseq
    %v449 = vshrl.u32 %v448, 7
    %v450 = vsub.s32 1, %v449
    %v451 = vrot.slane %v442, %v450
    %v452 = vlaneseq
    %v453 = vshrl.u32 %v452, 7
    %v454 = vsub.s32 2, %v453
    %v455 = vrot.slane %v442, %v454
    %459 = vmatprep.subr.mxu0 %v395
    %460 = vmatpush1.msra.mxu0 %v394
    %461 = vmatprep.subr.mxu0 %v398
    %462 = vmatpush1.msra.mxu0 %v397
    %463 = vmatprep.subr.mxu0 %v401
    %464 = vmatpush1.msra.mxu0 %v400
    %465 = vmatprep.subr.mxu0 %v404
    %466 = vmatpush1.msra.mxu0 %v403
    %467 = vmatprep.subr.mxu0 %v407
    %468 = vmatpush1.msra.mxu0 %v406
    %469 = vmatprep.subr.mxu0 %v410
    %470 = vmatpush1.msra.mxu0 %v409
    %471 = vmatprep.subr.mxu0 %v413
    %472 = vmatpush1.msra.mxu0 %v412
    %473 = vmatprep.subr.mxu0 %v416
    %474 = vmatpush1.msra.mxu0 %v415
    %475 = vmatprep.subr.mxu0 %v419
    %476 = vmatpush1.msra.mxu0 %v418
    %477 = vmatprep.subr.mxu0 %v422
    %478 = vmatpush1.msra.mxu0 %v421
    %479 = vmatprep.subr.mxu0 %v425
    %480 = vmatpush1.msra.mxu0 %v424
    %481 = vmatprep.subr.mxu0 %v428
    %482 = vmatpush1.msra.mxu0 %v427
    %483 = vmatprep.subr.mxu0 %v431
    %484 = vmatpush1.msra.mxu0 %v430
    %485 = vmatprep.subr.mxu0 %v434
    %486 = vmatpush1.msra.mxu0 %v433
    %487 = vmatprep.subr.mxu0 %v437
    %488 = vmatpush1.msra.mxu0 %v436
    %489 = vmatprep.subr.mxu0 %v440
    %490 = vmatpush1.msra.mxu0 %v439
    %491 = vmatprep.subr.mxu0 0.0
    %492 = vmatpush1.msra.mxu0 0.0
    %493 = vmatprep.subr.mxu0 0.0
    %494 = vmatpush1.msra.mxu0 0.0
    %495 = vmatprep.subr.mxu0 0.0
    %496 = vmatpush1.msra.mxu0 0.0
    %497 = vmatprep.subr.mxu0 0.0
    %498 = vmatpush1.msra.mxu0 0.0
    %499 = vmatprep.subr.mxu0 0.0
    %500 = vmatpush1.msra.mxu0 0.0
    %501 = vmatprep.subr.mxu0 0.0
    %502 = vmatpush1.msra.mxu0 0.0
    %503 = vmatprep.subr.mxu0 0.0
    %504 = vmatpush1.msra.mxu0 0.0
    %505 = vmatprep.subr.mxu0 0.0
    %506 = vmatpush1.msra.mxu0 0.0
    %507 = vmatprep.subr.mxu0 0.0
    %508 = vmatpush1.msra.mxu0 0.0
    %509 = vmatprep.subr.mxu0 0.0
    %510 = vmatpush1.msra.mxu0 0.0
    %511 = vmatprep.subr.mxu0 0.0
    %512 = vmatpush1.msra.mxu0 0.0
    %513 = vmatprep.subr.mxu0 0.0
    %514 = vmatpush1.msra.mxu0 0.0
    %515 = vmatprep.subr.mxu0 0.0
    %516 = vmatpush1.msra.mxu0 0.0
    %517 = vmatprep.subr.mxu0 0.0
    %518 = vmatpush1.msra.mxu0 0.0
    %519 = vmatprep.subr.mxu0 0.0
    %520 = vmatpush1.msra.mxu0 0.0
    %521 = vmatprep.subr.mxu0 0.0
    %522 = vmatpush1.msra.mxu0 0.0
    %523 = vmatprep.mubr.f32.mxu0 0.0
    %524 = vmatmul.mubr.f32.gmra.mrb[0].mxu0 %v102
    %v525 = vpop.f32.mrb[0].mxu0
    %v526 = vadd.f32 %v447, %v525
    %v527 = vpop.f32.mrb[0].mxu0
    %v528 = vadd.f32 %v451, %v527
    %529 = vdwg.mxu0
    %530 = vmatprep.subr.mxu0 0.0
    %531 = vmatpush1.msra.mxu0 %v396
    %532 = vmatprep.subr.mxu0 0.0
    %533 = vmatpush1.msra.mxu0 %v399
    %534 = vmatprep.subr.mxu0 0.0
    %535 = vmatpush1.msra.mxu0 %v402
    %536 = vmatprep.subr.mxu0 0.0
    %537 = vmatpush1.msra.mxu0 %v405
    %538 = vmatprep.subr.mxu0 0.0
    %539 = vmatpush1.msra.mxu0 %v408
    %540 = vmatprep.subr.mxu0 0.0
    %541 = vmatpush1.msra.mxu0 %v411
    %542 = vmatprep.subr.mxu0 0.0
    %543 = vmatpush1.msra.mxu0 %v414
    %544 = vmatprep.subr.mxu0 0.0
    %545 = vmatpush1.msra.mxu0 %v417
    %546 = vmatprep.subr.mxu0 0.0
    %547 = vmatpush1.msra.mxu0 %v420
    %548 = vmatprep.subr.mxu0 0.0
    %549 = vmatpush1.msra.mxu0 %v423
    %550 = vmatprep.subr.mxu0 0.0
    %551 = vmatpush1.msra.mxu0 %v426
    %552 = vmatprep.subr.mxu0 0.0
    %553 = vmatpush1.msra.mxu0 %v429
    %554 = vmatprep.subr.mxu0 0.0
    %555 = vmatpush1.msra.mxu0 %v432
    %556 = vmatprep.subr.mxu0 0.0
    %557 = vmatpush1.msra.mxu0 %v435
    %558 = vmatprep.subr.mxu0 0.0
    %559 = vmatpush1.msra.mxu0 %v438
    %560 = vmatprep.subr.mxu0 0.0
    %561 = vmatpush1.msra.mxu0 %v441
    %562 = vmatprep.subr.mxu0 0.0
    %563 = vmatpush1.msra.mxu0 0.0
    %564 = vmatprep.subr.mxu0 0.0
    %565 = vmatpush1.msra.mxu0 0.0
    %566 = vmatprep.subr.mxu0 0.0
    %567 = vmatpush1.msra.mxu0 0.0
    %568 = vmatprep.subr.mxu0 0.0
    %569 = vmatpush1.msra.mxu0 0.0
    %570 = vmatprep.subr.mxu0 0.0
    %571 = vmatpush1.msra.mxu0 0.0
    %572 = vmatprep.subr.mxu0 0.0
    %573 = vmatpush1.msra.mxu0 0.0
    %574 = vmatprep.subr.mxu0 0.0
    %575 = vmatpush1.msra.mxu0 0.0
    %576 = vmatprep.subr.mxu0 0.0
    %577 = vmatpush1.msra.mxu0 0.0
    %578 = vmatprep.subr.mxu0 0.0
    %579 = vmatpush1.msra.mxu0 0.0
    %580 = vmatprep.subr.mxu0 0.0
    %581 = vmatpush1.msra.mxu0 0.0
    %582 = vmatprep.subr.mxu0 0.0
    %583 = vmatpush1.msra.mxu0 0.0
    %584 = vmatprep.subr.mxu0 0.0
    %585 = vmatpush1.msra.mxu0 0.0
    %586 = vmatprep.subr.mxu0 0.0
    %587 = vmatpush1.msra.mxu0 0.0
    %588 = vmatprep.subr.mxu0 0.0
    %589 = vmatpush1.msra.mxu0 0.0
    %590 = vmatprep.subr.mxu0 0.0
    %591 = vmatpush1.msra.mxu0 0.0
    %592 = vmatprep.subr.mxu0 0.0
    %593 = vmatpush1.msra.mxu0 0.0
    %594 = vmatprep.mubr.f32.mxu0 0.0
    %595 = vmatmul.mubr.f32.gmra.mrb[0].mxu0 %v102
    %v596 = vpop.f32.mrb[0].mxu0
    %v597 = vadd.f32 %v455, %v596
    %v598 = vpop.f32.mrb[0].mxu0
    %599 = vdwg.mxu0
    %v600 = vadd.f32 %v320, %v526
    %v601 = vxor.u32 %v600, 2147483648
    %v602 = vmul.f32 %v601, 1.442695
    %v603 = vpow.pop %v602
    %v604 = vadd.f32 %v603, 1.0
    %v605 = vrcp.pop %v604
    %v606 = vmul.f32 1.0, %v605
    %v607 = vadd.f32 %v322, %v528
    %v608 = vxor.u32 %v607, 2147483648
    %v609 = vmul.f32 %v608, 1.442695
    %v610 = vpow.pop %v609
    %v611 = vadd.f32 %v610, 1.0
    %v612 = vrcp.pop %v611
    %v613 = vmul.f32 1.0, %v612
    %v614 = vmul.f32 %v606, %v597
    %v615 = vadd.f32 %v391, %v614
    %v616 = vtanh.pop %v615
    %v617 = vsub.f32 1.0, %v613
    %v618 = vmul.f32 %v617, %v616
    %v619 = vmul.f32 %v613, %v102
    %v620 = vadd.f32 %v618, %v619
    %v621 = vld [vmem:[#allocation7] sm:$0xff]
    %v622 = vld [vmem:[#allocation7 + $0x8] sm:$0xff]
    %v623 = vld [vmem:[#allocation7 + $0x10] sm:$0xff]
    %v624 = vld [vmem:[#allocation7 + $0x18] sm:$0xff]
    %v625 = vld [vmem:[#allocation7 + $0x20] sm:$0xff]
    %v626 = vld [vmem:[#allocation7 + $0x28] sm:$0xff]
    %v627 = vld [vmem:[#allocation7 + $0x30] sm:$0xff]
    %v628 = vld [vmem:[#allocation7 + $0x38] sm:$0xff]
    %v629 = vld [vmem:[#allocation7 + $0x40] sm:$0xff]
    %v630 = vld [vmem:[#allocation7 + $0x48] sm:$0xff]
    %v631 = vld [vmem:[#allocation7 + $0x50] sm:$0xff]
    %v632 = vld [vmem:[#allocation7 + $0x58] sm:$0xff]
    %v633 = vld [vmem:[#allocation7 + $0x60] sm:$0xff]
    %v634 = vld [vmem:[#allocation7 + $0x68] sm:$0xff]
    %v635 = vld [vmem:[#allocation7 + $0x70] sm:$0xff]
    %v636 = vld [vmem:[#allocation7 + $0x78] sm:$0xff]
    %v637 = vld [vmem:[#allocation9] sm:$0x1]
    %v639 = vlaneseq
    %v640 = vshrl.u32 %v639, 7
    %v641 = vsub.s32 0, %v640
    %v642 = vrot.slane %v637, %v641
    %644 = vmatprep.subr.mxu0 0.0
    %645 = vmatpush1.msra.mxu0 %v621
    %646 = vmatprep.subr.mxu0 0.0
    %647 = vmatpush1.msra.mxu0 %v622
    %648 = vmatprep.subr.mxu0 0.0
    %649 = vmatpush1.msra.mxu0 %v623
    %650 = vmatprep.subr.mxu0 0.0
    %651 = vmatpush1.msra.mxu0 %v624
    %652 = vmatprep.subr.mxu0 0.0
    %653 = vmatpush1.msra.mxu0 %v625
    %654 = vmatprep.subr.mxu0 0.0
    %655 = vmatpush1.msra.mxu0 %v626
    %656 = vmatprep.subr.mxu0 0.0
    %657 = vmatpush1.msra.mxu0 %v627
    %658 = vmatprep.subr.mxu0 0.0
    %659 = vmatpush1.msra.mxu0 %v628
    %660 = vmatprep.subr.mxu0 0.0
    %661 = vmatpush1.msra.mxu0 %v629
    %662 = vmatprep.subr.mxu0 0.0
    %663 = vmatpush1.msra.mxu0 %v630
    %664 = vmatprep.subr.mxu0 0.0
    %665 = vmatpush1.msra.mxu0 %v631
    %666 = vmatprep.subr.mxu0 0.0
    %667 = vmatpush1.msra.mxu0 %v632
    %668 = vmatprep.subr.mxu0 0.0
    %669 = vmatpush1.msra.mxu0 %v633
    %670 = vmatprep.subr.mxu0 0.0
    %671 = vmatpush1.msra.mxu0 %v634
    %672 = vmatprep.subr.mxu0 0.0
    %673 = vmatpush1.msra.mxu0 %v635
    %674 = vmatprep.subr.mxu0 0.0
    %675 = vmatpush1.msra.mxu0 %v636
    %676 = vmatprep.subr.mxu0 0.0
    %677 = vmatpush1.msra.mxu0 0.0
    %678 = vmatprep.subr.mxu0 0.0
    %679 = vmatpush1.msra.mxu0 0.0
    %680 = vmatprep.subr.mxu0 0.0
    %681 = vmatpush1.msra.mxu0 0.0
    %682 = vmatprep.subr.mxu0 0.0
    %683 = vmatpush1.msra.mxu0 0.0
    %684 = vmatprep.subr.mxu0 0.0
    %685 = vmatpush1.msra.mxu0 0.0
    %686 = vmatprep.subr.mxu0 0.0
    %687 = vmatpush1.msra.mxu0 0.0
    %688 = vmatprep.subr.mxu0 0.0
    %689 = vmatpush1.msra.mxu0 0.0
    %690 = vmatprep.subr.mxu0 0.0
    %691 = vmatpush1.msra.mxu0 0.0
    %692 = vmatprep.subr.mxu0 0.0
    %693 = vmatpush1.msra.mxu0 0.0
    %694 = vmatprep.subr.mxu0 0.0
    %695 = vmatpush1.msra.mxu0 0.0
    %696 = vmatprep.subr.mxu0 0.0
    %697 = vmatpush1.msra.mxu0 0.0
    %698 = vmatprep.subr.mxu0 0.0
    %699 = vmatpush1.msra.mxu0 0.0
    %700 = vmatprep.subr.mxu0 0.0
    %701 = vmatpush1.msra.mxu0 0.0
    %702 = vmatprep.subr.mxu0 0.0
    %703 = vmatpush1.msra.mxu0 0.0
    %704 = vmatprep.subr.mxu0 0.0
    %705 = vmatpush1.msra.mxu0 0.0
    %706 = vmatprep.subr.mxu0 0.0
    %707 = vmatpush1.msra.mxu0 0.0
    %708 = vmatprep.mubr.f32.mxu0 0.0
    %709 = vmatmul.mubr.f32.gmra.mrb[0].mxu0 %v620
    %v710 = vpop.f32.mrb[0].mxu0
    %v711 = vadd.f32 %v642, %v710
    %v712 = vpop.f32.mrb[0].mxu0
    %713 = vdwg.mxu0
    %714 = vst [vmem:[%s10] sm:$0x3] %v711
    %715 = vst [vmem:[%s11] sm:$0x3] %v620
    // Predicated region
    $region62: #{gru_emitter_forward.1} parent=1 // pred_check
      _
    $region63: #{gru_emitter_forward.1} parent=1 // pred_check_branch
      %717 = sbr.rel (0) target = $region65
    $region64: #{gru_emitter_forward.1} parent=1 // pred_region
      _
    $region65: #{gru_emitter_forward.1} parent=1 // pred_fallthru
      _
    // Predicated region
    $region66: #{gru_emitter_forward.1} parent=1 // pred_check
      _
    $region67: #{gru_emitter_forward.1} parent=1 // pred_check_branch
      %719 = sbr.rel (0) target = $region69
    $region68: #{gru_emitter_forward.1} parent=1 // pred_region
      _
    $region69: #{gru_emitter_forward.1} parent=1 // pred_fallthru
      _
    // Predicated region
    $region70: #{gru_emitter_forward.1} parent=1 // pred_check
      _
    $region71: #{gru_emitter_forward.1} parent=1 // pred_check_branch
      %721 = sbr.rel (0) target = $region73
    $region72: #{gru_emitter_forward.1} parent=1 // pred_region
      _
    $region73: #{gru_emitter_forward.1} parent=1 // pred_fallthru
      _
    // Predicated region
    $region74: #{gru_emitter_forward.1} parent=1 // pred_check
      _
    $region75: #{gru_emitter_forward.1} parent=1 // pred_check_branch
      %723 = sbr.rel (0) target = $region77
    $region76: #{gru_emitter_forward.1} parent=1 // pred_region
      _
    $region77: #{gru_emitter_forward.1} parent=1 // pred_fallthru
      _
    %724 = vsyncpa [#allocation3], 1
    %725 = vsyncpa [#allocation5], 1
    %726 = vsyncpa [#allocation8], 1

</llo_original>
